<compile_context>
chip_gen: v7x
topology: tpu7x:2x2x1
jax: 0.10.0
libtpu: 0.0.40
codegen_flags: <defaults>
</compile_context>

<pallas_src>
import functools
import math

import jax
import jax.numpy as jnp
from jax.experimental import pallas as pl
from jax.experimental.pallas import tpu as pltpu


def _round_up(a, m):
    return (a + m - 1) // m * m


def _mini_block_kernel(x_ref, wt_ref, bt_ref, *rest, K, pad, has_res_conv):
    """One grid step: TN batch rows x full (padded) time axis.

    x_ref : (Cin, TL)        TL = TN * Hseg, TL % 128 == 0
    wt_ref: (K, Cout, Cin)   BN-folded temporal conv taps
    bt_ref: (Cout, 1)        BN-folded conv bias (f32)
    [wr_ref: (Cout, Cin), br_ref: (Cout, 1)]  BN-folded 1x1x1 residual proj
    o_ref : (Cout, TL)
    """
    if has_res_conv:
        wr_ref, br_ref, o_ref = rest
    else:
        (o_ref,) = rest

    x = x_ref[...]                               # native dtype (f32 or bf16)
    tl = x.shape[1]

    # Temporal conv: out[:, j] = sum_k Wk @ x[:, j + k]
    acc = jnp.dot(wt_ref[0], x, preferred_element_type=jnp.float32)
    x_c = x                                      # pad-aligned copy for residual
    for k in range(1, K):
        # Left-shift by k lanes (roll by TL - k). Wrapped lanes only land in
        # discarded per-segment pad columns (lane >= H), never in valid output.
        xs = pltpu.roll(x, tl - k, 1)
        if k == pad:
            x_c = xs                             # reuse this shift for the residual
        acc = acc + jnp.dot(wt_ref[k], xs, preferred_element_type=jnp.float32)
    acc = acc + bt_ref[...]                      # (Cout, 1) broadcast over lanes

    # ELU (alpha = 1); Dropout is identity in eval mode.
    act = jnp.where(acc > 0.0, acc, jnp.exp(acc) - 1.0)

    # Residual branch, aligned to output position h via the pad-lane shift.
    if has_res_conv:
        res = jnp.dot(wr_ref[...], x_c, preferred_element_type=jnp.float32)
        res = res + br_ref[...]
    else:
        res = x_c.astype(jnp.float32)

    o_ref[...] = (act + res).astype(o_ref.dtype)


def _choose_time_segment(H, pad, N):
    """Pick Hseg >= H + 2*pad minimizing padded lanes; return (Hseg, unit)
    where TN must be a multiple of `unit` so that TN * Hseg % 128 == 0."""
    base = H + 2 * pad
    best = None
    for j in range(8):                           # round base up to 1,2,4,...,128
        hseg = _round_up(base, 1 << j)
        unit = 128 // math.gcd(hseg, 128)
        cost = _round_up(max(N, 1), unit) * hseg
        if best is None or cost < best[0]:
            best = (cost, hseg, unit)
    return best[1], best[2]


def eegsym_residual_mini_block(x, params, *, padding, eps=1e-5,
                               vmem_block_budget_bytes=20 * 1024 * 1024,
                               min_grid_steps=4):
    """Eval-mode forward of EEGSym_residual_mini_block.

    x: (B, Cin, D, H, W) (PyTorch Conv3d layout).
    params: conv_w (Cout,Cin,1,K,1), conv_b (Cout,), bn_{gamma,beta,mean,var}
            and, iff Cin != Cout: res_w (Cout,Cin,1,1,1), res_b,
            res_bn_{gamma,beta,mean,var}.
    Returns (B, Cout, D, H, W).
    """
    B, Cin, D, H, W = x.shape
    conv_w = params["conv_w"]
    Cout = int(conv_w.shape[0])
    K = int(conv_w.shape[3])
    pad = int(padding[0]) if isinstance(padding, (tuple, list)) else int(padding)
    has_res_conv = Cin != Cout
    # torch.add(out, res) requires matching time lengths -> 'same' temporal conv.
    assert 2 * pad == K - 1, "residual add requires H + 2*pad - K + 1 == H"

    # ---- fold BatchNorm (running stats) into conv weights & biases -----------
    f32 = jnp.float32
    mm_dtype = x.dtype if x.dtype == jnp.bfloat16 else f32
    s = params["bn_gamma"].astype(f32) / jnp.sqrt(params["bn_var"].astype(f32) + eps)
    w_t = conv_w[:, :, 0, :, 0].astype(f32) * s[:, None, None]          # (Cout,Cin,K)
    w_t = jnp.transpose(w_t, (2, 0, 1)).astype(mm_dtype)                # (K,Cout,Cin)
    b_t = ((params["conv_b"].astype(f32) - params["bn_mean"].astype(f32)) * s
           + params["bn_beta"].astype(f32)).reshape(Cout, 1)
    if has_res_conv:
        sr = (params["res_bn_gamma"].astype(f32)
              / jnp.sqrt(params["res_bn_var"].astype(f32) + eps))
        w_r = (params["res_w"][:, :, 0, 0, 0].astype(f32) * sr[:, None]).astype(mm_dtype)
        b_r = ((params["res_b"].astype(f32) - params["res_bn_mean"].astype(f32)) * sr
               + params["res_bn_beta"].astype(f32)).reshape(Cout, 1)

    # ---- layout: (B,Cin,D,H,W) -> (Cin, N2*Hseg), time last ------------------
    # Per-row segment Hseg is only slightly padded; 128-lane alignment is
    # achieved at the block level (TN multiple of `unit`).
    N = B * D * W
    Hseg, unit = _choose_time_segment(H, pad, N)

    itemsize = x.dtype.itemsize
    # Per-row VMEM estimate: double-buffered in/out blocks + in-kernel
    # temporaries (roll copy + stashed pad-shift in x dtype; acc/act/res in f32).
    per_row_vmem = Hseg * (4 * Cin * itemsize + 2 * Cout * itemsize + 3 * Cout * 4)
    tn_vmem = max(1, vmem_block_budget_bytes // per_row_vmem)
    tn_steps = max(1, -(-N // max(1, min_grid_steps)))     # aim for >= min_grid_steps
    TN = max(unit, (min(tn_vmem, tn_steps) // unit) * unit)
    N2 = _round_up(N, TN)
    TL = TN * Hseg                                         # TL % 128 == 0

    xt = jnp.transpose(x, (1, 0, 2, 4, 3)).reshape(Cin, N, H)
    xt = jnp.pad(xt, ((0, 0), (0, N2 - N), (pad, Hseg - H - pad)))   # single pad pass
    x_flat = xt.reshape(Cin, N2 * Hseg)

    kernel = functools.partial(_mini_block_kernel, K=K, pad=pad,
                               has_res_conv=has_res_conv)

    in_specs = [
        pl.BlockSpec((Cin, TL), lambda i: (0, i)),           # rows i*TN..(i+1)*TN
        pl.BlockSpec((K, Cout, Cin), lambda i: (0, 0, 0)),   # full weight tensor
        pl.BlockSpec((Cout, 1), lambda i: (0, 0)),
    ]
    args = [x_flat, w_t, b_t]
    if has_res_conv:
        in_specs += [pl.BlockSpec((Cout, Cin), lambda i: (0, 0)),
                     pl.BlockSpec((Cout, 1), lambda i: (0, 0))]
        args += [w_r, b_r]

    est_step_bytes = TL * (4 * Cin * itemsize + 2 * Cout * itemsize + 3 * Cout * 4)
    vmem_limit = int(min(48 << 20, max(32 << 20, 2 * est_step_bytes)))

    out_flat = pl.pallas_call(
        kernel,
        out_shape=jax.ShapeDtypeStruct((Cout, N2 * Hseg), x.dtype),
        grid=(N2 // TN,),
        in_specs=in_specs,
        out_specs=pl.BlockSpec((Cout, TL), lambda i: (0, i)),
        compiler_params=pltpu.CompilerParams(
            dimension_semantics=("parallel",),
            vmem_limit_bytes=vmem_limit),
    )(*args)

    # Glue back to the PyTorch layout (B, Cout, D, H, W).
    out = out_flat.reshape(Cout, N2, Hseg)[:, :N, :H]
    out = out.reshape(Cout, B, D, W, H)
    return jnp.transpose(out, (1, 0, 2, 4, 3))


# ----------------------------- pure-JAX reference -----------------------------
def _reference_forward(x, params, padding, eps=1e-5):
    conv_w = params["conv_w"]
    B, Cin, D, H, W = x.shape
    Cout, _, _, K, _ = conv_w.shape
    pad = int(padding[0]) if isinstance(padding, (tuple, list)) else int(padding)

    def bn(z, g, b, m, v):
        s = g / jnp.sqrt(v + eps)
        return z * s[None, :, None, None, None] + (b - m * s)[None, :, None, None, None]

    xp = jnp.pad(x, ((0, 0), (0, 0), (0, 0), (pad, pad), (0, 0)))
    z = jnp.zeros((B, Cout, D, H, W), jnp.float32)
    for k in range(K):
        z = z + jnp.einsum("oc,bcdhw->bodhw", conv_w[:, :, 0, k, 0],
                           xp[:, :, :, k:k + H, :], precision="highest")
    z = z + params["conv_b"][None, :, None, None, None]
    z = bn(z, params["bn_gamma"], params["bn_beta"], params["bn_mean"], params["bn_var"])
    out = jnp.where(z > 0.0, z, jnp.exp(z) - 1.0)          # ELU; Dropout = identity
    if Cin != Cout:
        r = jnp.einsum("oc,bcdhw->bodhw", params["res_w"][:, :, 0, 0, 0], x,
                       precision="highest")
        r = r + params["res_b"][None, :, None, None, None]
        r = bn(r, params["res_bn_gamma"], params["res_bn_beta"],
               params["res_bn_mean"], params["res_bn_var"])
    else:
        r = x
    return out + r


if __name__ == "__main__":
    key = jax.random.PRNGKey(0)

    def make_params(k, Cin, Cout, K):
        ks = jax.random.split(k, 12)
        p = {
            "conv_w": 0.2 * jax.random.normal(ks[0], (Cout, Cin, 1, K, 1), jnp.float32),
            "conv_b": 0.1 * jax.random.normal(ks[1], (Cout,), jnp.float32),
            "bn_gamma": 1.0 + 0.1 * jax.random.normal(ks[2], (Cout,), jnp.float32),
            "bn_beta": 0.1 * jax.random.normal(ks[3], (Cout,), jnp.float32),
            "bn_mean": 0.1 * jax.random.normal(ks[4], (Cout,), jnp.float32),
            "bn_var": jax.random.uniform(ks[5], (Cout,), jnp.float32, 0.5, 1.5),
        }
        if Cin != Cout:
            p.update({
                "res_w": 0.2 * jax.random.normal(ks[6], (Cout, Cin, 1, 1, 1), jnp.float32),
                "res_b": 0.1 * jax.random.normal(ks[7], (Cout,), jnp.float32),
                "res_bn_gamma": 1.0 + 0.1 * jax.random.normal(ks[8], (Cout,), jnp.float32),
                "res_bn_beta": 0.1 * jax.random.normal(ks[9], (Cout,), jnp.float32),
                "res_bn_mean": 0.1 * jax.random.normal(ks[10], (Cout,), jnp.float32),
                "res_bn_var": jax.random.uniform(ks[11], (Cout,), jnp.float32, 0.5, 1.5),
            })
        return p

    kx1, kp1, kx2, kp2 = jax.random.split(key, 4)

    # Case 1: inChannel != outChannel -> projection residual (1x1x1 conv + BN).
    B, Cin, Cout, D, H, W, K, pad = 2, 8, 16, 2, 16, 4, 3, 1
    x1 = jax.random.normal(kx1, (B, Cin, D, H, W), jnp.float32)
    p1 = make_params(kp1, Cin, Cout, K)
    y1 = jax.block_until_ready(eegsym_residual_mini_block(x1, p1, padding=(pad,)))
    r1 = _reference_forward(x1, p1, (pad,))
    assert y1.shape == (B, Cout, D, H, W), y1.shape
    assert y1.dtype == x1.dtype
    assert jnp.allclose(y1, r1, atol=2e-2, rtol=2e-2), float(jnp.max(jnp.abs(y1 - r1)))

    # Case 2: inChannel == outChannel -> identity residual (exercises grid >= 2).
    B, C, D, H, W, K, pad = 1, 8, 2, 20, 3, 5, 2
    x2 = jax.random.normal(kx2, (B, C, D, H, W), jnp.float32)
    p2 = make_params(kp2, C, C, K)
    y2 = jax.block_until_ready(eegsym_residual_mini_block(x2, p2, padding=(pad,)))
    r2 = _reference_forward(x2, p2, (pad,))
    assert y2.shape == (B, C, D, H, W), y2.shape
    assert jnp.allclose(y2, r2, atol=2e-2, rtol=2e-2), float(jnp.max(jnp.abs(y2 - r2)))

    print("KERNEL_OK")
</pallas_src>

<mosaic_0001>
module attributes {stable_mosaic.version = 11 : i64} {
  func.func @_mini_block_kernel(%arg0: i32, %arg1: memref<8x384xf32, #tpu.memory_space<vmem>>, %arg2: memref<3x16x8xf32, #tpu.memory_space<vmem>>, %arg3: memref<16x1xf32, #tpu.memory_space<vmem>>, %arg4: memref<16x8xf32, #tpu.memory_space<vmem>>, %arg5: memref<16x1xf32, #tpu.memory_space<vmem>>, %arg6: memref<16x384xf32, #tpu.memory_space<vmem>>) attributes {dimension_semantics = [#tpu.dimension_semantics<parallel>], iteration_bounds = array<i64: 1>, scalar_prefetch = 0 : i64, scratch_operands = 0 : i64, tpu.core_type = #tpu.core_type<tc>, window_params = [{transform_indices = @transform_0, window_bounds = array<i64: 8, 384>}, {pipeline_mode = #tpu.pipeline_mode<synchronous>, transform_indices = @transform_1, window_bounds = array<i64: 3, 16, 8>}, {pipeline_mode = #tpu.pipeline_mode<synchronous>, transform_indices = @transform_2, window_bounds = array<i64: 16, 1>}, {pipeline_mode = #tpu.pipeline_mode<synchronous>, transform_indices = @transform_3, window_bounds = array<i64: 16, 8>}, {pipeline_mode = #tpu.pipeline_mode<synchronous>, transform_indices = @transform_4, window_bounds = array<i64: 16, 1>}, {transform_indices = @transform_5, window_bounds = array<i64: 16, 384>}]} {
    %c0 = arith.constant 0 : index
    %c0_0 = arith.constant 0 : index
    %0 = vector.load %arg1[%c0, %c0_0] : memref<8x384xf32, #tpu.memory_space<vmem>>, vector<8x384xf32>
    %c0_1 = arith.constant 0 : index
    %c0_2 = arith.constant 0 : index
    %c0_3 = arith.constant 0 : index
    %1 = vector.load %arg2[%c0_1, %c0_2, %c0_3] : memref<3x16x8xf32, #tpu.memory_space<vmem>>, vector<1x16x8xf32>
    %2 = vector.shape_cast %1 : vector<1x16x8xf32> to vector<16x8xf32>
    %cst = arith.constant dense<0.000000e+00> : vector<16x384xf32>
    %3 = tpu.matmul %2, %0, %cst {dimension_numbers = #tpu.dot_dimension_numbers<[1], [0], [0], [1], [0, 0, 1, 1], [], []>} : vector<16x8xf32>, vector<8x384xf32>, vector<16x384xf32> -> vector<16x384xf32>
    %c383_i32 = arith.constant 383 : i32
    %4 = tpu.dynamic_rotate %0 by %c383_i32 dim 1 : vector<8x384xf32>, i32 -> vector<8x384xf32>
    %c1 = arith.constant 1 : index
    %c0_4 = arith.constant 0 : index
    %c0_5 = arith.constant 0 : index
    %5 = vector.load %arg2[%c1, %c0_4, %c0_5] : memref<3x16x8xf32, #tpu.memory_space<vmem>>, vector<1x16x8xf32>
    %6 = vector.shape_cast %5 : vector<1x16x8xf32> to vector<16x8xf32>
    %cst_6 = arith.constant dense<0.000000e+00> : vector<16x384xf32>
    %7 = tpu.matmul %6, %4, %cst_6 {dimension_numbers = #tpu.dot_dimension_numbers<[1], [0], [0], [1], [0, 0, 1, 1], [], []>} : vector<16x8xf32>, vector<8x384xf32>, vector<16x384xf32> -> vector<16x384xf32>
    %8 = arith.addf %3, %7 : vector<16x384xf32>
    %c382_i32 = arith.constant 382 : i32
    %9 = tpu.dynamic_rotate %0 by %c382_i32 dim 1 : vector<8x384xf32>, i32 -> vector<8x384xf32>
    %c2 = arith.constant 2 : index
    %c0_7 = arith.constant 0 : index
    %c0_8 = arith.constant 0 : index
    %10 = vector.load %arg2[%c2, %c0_7, %c0_8] : memref<3x16x8xf32, #tpu.memory_space<vmem>>, vector<1x16x8xf32>
    %11 = vector.shape_cast %10 : vector<1x16x8xf32> to vector<16x8xf32>
    %cst_9 = arith.constant dense<0.000000e+00> : vector<16x384xf32>
    %12 = tpu.matmul %11, %9, %cst_9 {dimension_numbers = #tpu.dot_dimension_numbers<[1], [0], [0], [1], [0, 0, 1, 1], [], []>} : vector<16x8xf32>, vector<8x384xf32>, vector<16x384xf32> -> vector<16x384xf32>
    %13 = arith.addf %8, %12 : vector<16x384xf32>
    %c0_10 = arith.constant 0 : index
    %c0_11 = arith.constant 0 : index
    %14 = vector.load %arg3[%c0_10, %c0_11] : memref<16x1xf32, #tpu.memory_space<vmem>>, vector<16x1xf32>
    %15 = vector.broadcast %14 : vector<16x1xf32> to vector<16x384xf32>
    %16 = arith.addf %13, %15 : vector<16x384xf32>
    %cst_12 = arith.constant 0.000000e+00 : f32
    %17 = vector.broadcast %cst_12 : f32 to vector<16x384xf32>
    %18 = arith.cmpf ogt, %16, %17 : vector<16x384xf32>
    %19 = math.exp %16 : vector<16x384xf32>
    %cst_13 = arith.constant 1.000000e+00 : f32
    %20 = vector.broadcast %cst_13 : f32 to vector<16x384xf32>
    %21 = arith.subf %19, %20 : vector<16x384xf32>
    %22 = arith.select %18, %16, %21 : vector<16x384xi1>, vector<16x384xf32>
    %c0_14 = arith.constant 0 : index
    %c0_15 = arith.constant 0 : index
    %23 = vector.load %arg4[%c0_14, %c0_15] : memref<16x8xf32, #tpu.memory_space<vmem>>, vector<16x8xf32>
    %cst_16 = arith.constant dense<0.000000e+00> : vector<16x384xf32>
    %24 = tpu.matmul %23, %4, %cst_16 {dimension_numbers = #tpu.dot_dimension_numbers<[1], [0], [0], [1], [0, 0, 1, 1], [], []>} : vector<16x8xf32>, vector<8x384xf32>, vector<16x384xf32> -> vector<16x384xf32>
    %c0_17 = arith.constant 0 : index
    %c0_18 = arith.constant 0 : index
    %25 = vector.load %arg5[%c0_17, %c0_18] : memref<16x1xf32, #tpu.memory_space<vmem>>, vector<16x1xf32>
    %26 = vector.broadcast %25 : vector<16x1xf32> to vector<16x384xf32>
    %27 = arith.addf %24, %26 : vector<16x384xf32>
    %28 = arith.addf %22, %27 : vector<16x384xf32>
    %c0_19 = arith.constant 0 : index
    %c0_20 = arith.constant 0 : index
    %29 = vector.load %arg6[%c0_19, %c0_20] : memref<16x384xf32, #tpu.memory_space<vmem>>, vector<16x384xf32>
    tpu.vector_store %arg6[%c0_19, %c0_20], %28 {strides = array<i32>} : memref<16x384xf32, #tpu.memory_space<vmem>>, vector<16x384xf32>,
    return
  }
  func.func @transform_0(%arg0: i32) -> (i32, i32) {
    %c0_i32 = arith.constant 0 : i32
    %c0_i32_0 = arith.constant 0 : i32
    return %c0_i32, %arg0 : i32, i32
  }
  func.func @transform_1(%arg0: i32) -> (i32, i32, i32) {
    %c0_i32 = arith.constant 0 : i32
    %c0_i32_0 = arith.constant 0 : i32
    %c0_i32_1 = arith.constant 0 : i32
    %c0_i32_2 = arith.constant 0 : i32
    return %c0_i32, %c0_i32_0, %c0_i32_1 : i32, i32, i32
  }
  func.func @transform_2(%arg0: i32) -> (i32, i32) {
    %c0_i32 = arith.constant 0 : i32
    %c0_i32_0 = arith.constant 0 : i32
    %c0_i32_1 = arith.constant 0 : i32
    return %c0_i32, %c0_i32_0 : i32, i32
  }
  func.func @transform_3(%arg0: i32) -> (i32, i32) {
    %c0_i32 = arith.constant 0 : i32
    %c0_i32_0 = arith.constant 0 : i32
    %c0_i32_1 = arith.constant 0 : i32
    return %c0_i32, %c0_i32_0 : i32, i32
  }
  func.func @transform_4(%arg0: i32) -> (i32, i32) {
    %c0_i32 = arith.constant 0 : i32
    %c0_i32_0 = arith.constant 0 : i32
    %c0_i32_1 = arith.constant 0 : i32
    return %c0_i32, %c0_i32_0 : i32, i32
  }
  func.func @transform_5(%arg0: i32) -> (i32, i32) {
    %c0_i32 = arith.constant 0 : i32
    %c0_i32_0 = arith.constant 0 : i32
    return %c0_i32, %arg0 : i32, i32
  }
}

</mosaic_0001>

<llo_original>
// kernel: tpu_custom_call.1
$region0: #{tpu_custom_call.1}
  #allocation0 [shape = 'u32[]', space=smem, size = 0x4, offset = 0x4, fixed_abs, tag = 'smem constant byte address 0x4 - core index']
  #allocation1 [shape = 'u32[144,128]{1,0:T(1,128)}', space=vmem, size = 0x12000, scoped, tag = 'internal scratch']
  %s0 = inlined_call_operand.vmem [shape: f32[8,384], index: 0, kind: input, shape index: {}]
  %s1 = inlined_call_operand.vmem [shape: f32[3,16,8], index: 1, kind: input, shape index: {}]
  %s2 = inlined_call_operand.vmem [shape: f32[16,1], index: 2, kind: input, shape index: {}]
  %s3 = inlined_call_operand.vmem [shape: f32[16,8], index: 3, kind: input, shape index: {}]
  %s4 = inlined_call_operand.vmem [shape: f32[16,1], index: 4, kind: input, shape index: {}]
  %s5 = inlined_call_operand.hbm [shape: f32[16,384], index: 5, kind: output, shape index: {}]
  %s6 = sld [smem:[#allocation0]]
  $region30: #{tpu_custom_call.1} parent=0
    _
  %s8 = ssub.s32 1, %s6
  %s9 = scalar_select 0, %s8, %s6
  $region1: #{tpu_custom_call.1} parent=0
    #allocation2 [shape = 'u8[24576]{0}', space=vmem, size = 0x6000, scoped, tag = 'output window, operand 0, single buffered']
    #allocation3 [shape = 's32[1]{0}', space=sflag, size = 0x4, scoped, tag = 'scoped memory for tpu_custom_call.1']
    %10 = vsyncpa [#allocation3], 0
    // Predicated region
    $region2: #{tpu_custom_call.1} parent=1 // pred_check
      _
    $region3: #{tpu_custom_call.1} parent=1 // pred_check_branch
      %12 = sbr.rel (0) target = $region5
    $region4: #{tpu_custom_call.1} parent=1 // pred_region
      _
    $region5: #{tpu_custom_call.1} parent=1 // pred_fallthru
      _
    // Predicated region
    $region6: #{tpu_custom_call.1} parent=1 // pred_check
      _
    $region7: #{tpu_custom_call.1} parent=1 // pred_check_branch
      %14 = sbr.rel (0) target = $region9
    $region8: #{tpu_custom_call.1} parent=1 // pred_region
      _
    $region9: #{tpu_custom_call.1} parent=1 // pred_fallthru
      _
    // Predicated region
    $region10: #{tpu_custom_call.1} parent=1 // pred_check
      _
    $region11: #{tpu_custom_call.1} parent=1 // pred_check_branch
      %16 = sbr.rel (0) target = $region13
    $region12: #{tpu_custom_call.1} parent=1 // pred_region
      _
    $region13: #{tpu_custom_call.1} parent=1 // pred_fallthru
      _
    // Predicated region
    $region14: #{tpu_custom_call.1} parent=1 // pred_check
      _
    $region15: #{tpu_custom_call.1} parent=1 // pred_check_branch
      %18 = sbr.rel (0) target = $region17
    $region16: #{tpu_custom_call.1} parent=1 // pred_region
      _
    $region17: #{tpu_custom_call.1} parent=1 // pred_fallthru
      _
    // Predicated region
    $region18: #{tpu_custom_call.1} parent=1 // pred_check
      _
    $region19: #{tpu_custom_call.1} parent=1 // pred_check_branch
      %20 = sbr.rel (0) target = $region21
    $region20: #{tpu_custom_call.1} parent=1 // pred_region
      _
    $region21: #{tpu_custom_call.1} parent=1 // pred_fallthru
      _
    %v21 = vld [vmem:[%s0] sm:$0xff]
    %v22 = vld [vmem:[%s0 + $0x8] sm:$0xff]
    %v23 = vld [vmem:[%s0 + $0x10] sm:$0xff]
    %v24 = vld [vmem:[%s1] sm:$0xff]
    %v25 = vld [vmem:[%s1 + $0x8] sm:$0xff]
    %26 = vrot.lane.b32.xlu0 %v21, 127
    %v27 = vpop.permute.xlu0 %26
    %28 = vrot.lane.b32.xlu0 %v22, 127
    %v29 = vpop.permute.xlu0 %28
    %30 = vrot.lane.b32.xlu0 %v23, 127
    %v31 = vpop.permute.xlu0 %30
    %v32 = vlaneseq
    %v33 = vand.u32 %v32, 127
    %vm34 = vcmp.lt.s32.totalorder %v33, 127
    %v35 = vsel %vm34, %v29, %v31
    %v36 = vsel %vm34, %v27, %v29
    %v37 = vsel %vm34, %v31, %v27
    %s38 = scalar_lea.vmem %s1, 16
    %v39 = vld [vmem:[%s38] sm:$0xff]
    %v40 = vld [vmem:[%s38 + $0x8] sm:$0xff]
    %vm41 = vcmask 64512
    %v43 = vsel %vm41, %v39, 0
    %v46 = vsel %vm41, %v40, 0
    %48 = vmatprep.subr.mxu0 %v35
    %49 = vmatpush1.msra.mxu0 %v36
    %50 = vmatprep.subr.mxu0 0.0
    %51 = vmatpush1.msra.mxu0 0.0
    %52 = vmatprep.subr.mxu0 0.0
    %53 = vmatpush1.msra.mxu0 0.0
    %54 = vmatprep.subr.mxu0 0.0
    %55 = vmatpush1.msra.mxu0 0.0
    %56 = vmatprep.subr.mxu0 0.0
    %57 = vmatpush1.msra.mxu0 0.0
    %58 = vmatprep.subr.mxu0 0.0
    %59 = vmatpush1.msra.mxu0 0.0
    %60 = vmatprep.subr.mxu0 0.0
    %61 = vmatpush1.msra.mxu0 0.0
    %62 = vmatprep.subr.mxu0 0.0
    %63 = vmatpush1.msra.mxu0 0.0
    %64 = vmatprep.subr.mxu0 0.0
    %65 = vmatpush1.msra.mxu0 0.0
    %66 = vmatprep.subr.mxu0 0.0
    %67 = vmatpush1.msra.mxu0 0.0
    %68 = vmatprep.subr.mxu0 0.0
    %69 = vmatpush1.msra.mxu0 0.0
    %70 = vmatprep.subr.mxu0 0.0
    %71 = vmatpush1.msra.mxu0 0.0
    %72 = vmatprep.subr.mxu0 0.0
    %73 = vmatpush1.msra.mxu0 0.0
    %74 = vmatprep.subr.mxu0 0.0
    %75 = vmatpush1.msra.mxu0 0.0
    %76 = vmatprep.subr.mxu0 0.0
    %77 = vmatpush1.msra.mxu0 0.0
    %78 = vmatprep.subr.mxu0 0.0
    %79 = vmatpush1.msra.mxu0 0.0
    %80 = vmatprep.subr.mxu0 0.0
    %81 = vmatpush1.msra.mxu0 0.0
    %82 = vmatprep.subr.mxu0 0.0
    %83 = vmatpush1.msra.mxu0 0.0
    %84 = vmatprep.subr.mxu0 0.0
    %85 = vmatpush1.msra.mxu0 0.0
    %86 = vmatprep.subr.mxu0 0.0
    %87 = vmatpush1.msra.mxu0 0.0
    %88 = vmatprep.subr.mxu0 0.0
    %89 = vmatpush1.msra.mxu0 0.0
    %90 = vmatprep.subr.mxu0 0.0
    %91 = vmatpush1.msra.mxu0 0.0
    %92 = vmatprep.subr.mxu0 0.0
    %93 = vmatpush1.msra.mxu0 0.0
    %94 = vmatprep.subr.mxu0 0.0
    %95 = vmatpush1.msra.mxu0 0.0
    %96 = vmatprep.subr.mxu0 0.0
    %97 = vmatpush1.msra.mxu0 0.0
    %98 = vmatprep.subr.mxu0 0.0
    %99 = vmatpush1.msra.mxu0 0.0
    %100 = vmatprep.subr.mxu0 0.0
    %101 = vmatpush1.msra.mxu0 0.0
    %102 = vmatprep.subr.mxu0 0.0
    %103 = vmatpush1.msra.mxu0 0.0
    %104 = vmatprep.subr.mxu0 0.0
    %105 = vmatpush1.msra.mxu0 0.0
    %106 = vmatprep.subr.mxu0 0.0
    %107 = vmatpush1.msra.mxu0 0.0
    %108 = vmatprep.subr.mxu0 0.0
    %109 = vmatpush1.msra.mxu0 0.0
    %110 = vmatprep.subr.mxu0 0.0
    %111 = vmatpush1.msra.mxu0 0.0
    %112 = vmatprep.mubr.f32.mxu0 0.0
    %113 = vmatmul.mubr.f32.gmra.mrb[0].mxu0 %v43
    %v114 = vpop.f32.mrb[0].mxu0
    %v115 = vadd.f32 0.0, %v114
    %v116 = vpop.f32.mrb[0].mxu0
    %v117 = vadd.f32 0.0, %v116
    %118 = vmatprep.mubr.f32.mxu0 0.0
    %119 = vmatmul.mubr.f32.gmra.mrb[0].mxu0 %v46
    %v120 = vpop.f32.mrb[0].mxu0
    %v121 = vadd.f32 0.0, %v120
    %v122 = vpop.f32.mrb[0].mxu0
    %v123 = vadd.f32 0.0, %v122
    %124 = vdwg.mxu0
    %125 = vmatprep.subr.mxu0 0.0
    %126 = vmatpush1.msra.mxu0 %v37
    %127 = vmatprep.subr.mxu0 0.0
    %128 = vmatpush1.msra.mxu0 0.0
    %129 = vmatprep.subr.mxu0 0.0
    %130 = vmatpush1.msra.mxu0 0.0
    %131 = vmatprep.subr.mxu0 0.0
    %132 = vmatpush1.msra.mxu0 0.0
    %133 = vmatprep.subr.mxu0 0.0
    %134 = vmatpush1.msra.mxu0 0.0
    %135 = vmatprep.subr.mxu0 0.0
    %136 = vmatpush1.msra.mxu0 0.0
    %137 = vmatprep.subr.mxu0 0.0
    %138 = vmatpush1.msra.mxu0 0.0
    %139 = vmatprep.subr.mxu0 0.0
    %140 = vmatpush1.msra.mxu0 0.0
    %141 = vmatprep.subr.mxu0 0.0
    %142 = vmatpush1.msra.mxu0 0.0
    %143 = vmatprep.subr.mxu0 0.0
    %144 = vmatpush1.msra.mxu0 0.0
    %145 = vmatprep.subr.mxu0 0.0
    %146 = vmatpush1.msra.mxu0 0.0
    %147 = vmatprep.subr.mxu0 0.0
    %148 = vmatpush1.msra.mxu0 0.0
    %149 = vmatprep.subr.mxu0 0.0
    %150 = vmatpush1.msra.mxu0 0.0
    %151 = vmatprep.subr.mxu0 0.0
    %152 = vmatpush1.msra.mxu0 0.0
    %153 = vmatprep.subr.mxu0 0.0
    %154 = vmatpush1.msra.mxu0 0.0
    %155 = vmatprep.subr.mxu0 0.0
    %156 = vmatpush1.msra.mxu0 0.0
    %157 = vmatprep.subr.mxu0 0.0
    %158 = vmatpush1.msra.mxu0 0.0
    %159 = vmatprep.subr.mxu0 0.0
    %160 = vmatpush1.msra.mxu0 0.0
    %161 = vmatprep.subr.mxu0 0.0
    %162 = vmatpush1.msra.mxu0 0.0
    %163 = vmatprep.subr.mxu0 0.0
    %164 = vmatpush1.msra.mxu0 0.0
    %165 = vmatprep.subr.mxu0 0.0
    %166 = vmatpush1.msra.mxu0 0.0
    %167 = vmatprep.subr.mxu0 0.0
    %168 = vmatpush1.msra.mxu0 0.0
    %169 = vmatprep.subr.mxu0 0.0
    %170 = vmatpush1.msra.mxu0 0.0
    %171 = vmatprep.subr.mxu0 0.0
    %172 = vmatpush1.msra.mxu0 0.0
    %173 = vmatprep.subr.mxu0 0.0
    %174 = vmatpush1.msra.mxu0 0.0
    %175 = vmatprep.subr.mxu0 0.0
    %176 = vmatpush1.msra.mxu0 0.0
    %177 = vmatprep.subr.mxu0 0.0
    %178 = vmatpush1.msra.mxu0 0.0
    %179 = vmatprep.subr.mxu0 0.0
    %180 = vmatpush1.msra.mxu0 0.0
    %181 = vmatprep.subr.mxu0 0.0
    %182 = vmatpush1.msra.mxu0 0.0
    %183 = vmatprep.subr.mxu0 0.0
    %184 = vmatpush1.msra.mxu0 0.0
    %185 = vmatprep.subr.mxu0 0.0
    %186 = vmatpush1.msra.mxu0 0.0
    %187 = vmatprep.subr.mxu0 0.0
    %188 = vmatpush1.msra.mxu0 0.0
    %189 = vmatprep.mubr.f32.mxu0 0.0
    %190 = vmatmul.mubr.f32.gmra.mrb[0].mxu0 %v43
    %v191 = vpop.f32.mrb[0].mxu0
    %v192 = vadd.f32 0.0, %v191
    %v193 = vpop.f32.mrb[0].mxu0
    %194 = vmatprep.mubr.f32.mxu0 0.0
    %195 = vmatmul.mubr.f32.gmra.mrb[0].mxu0 %v46
    %v196 = vpop.f32.mrb[0].mxu0
    %v197 = vadd.f32 0.0, %v196
    %v198 = vpop.f32.mrb[0].mxu0
    %199 = vdwg.mxu0
    %v201 = vsel %vm41, %v24, 0
    %v204 = vsel %vm41, %v25, 0
    %206 = vmatprep.subr.mxu0 %v22
    %207 = vmatpush1.msra.mxu0 %v21
    %208 = vmatprep.subr.mxu0 0.0
    %209 = vmatpush1.msra.mxu0 0.0
    %210 = vmatprep.subr.mxu0 0.0
    %211 = vmatpush1.msra.mxu0 0.0
    %212 = vmatprep.subr.mxu0 0.0
    %213 = vmatpush1.msra.mxu0 0.0
    %214 = vmatprep.subr.mxu0 0.0
    %215 = vmatpush1.msra.mxu0 0.0
    %216 = vmatprep.subr.mxu0 0.0
    %217 = vmatpush1.msra.mxu0 0.0
    %218 = vmatprep.subr.mxu0 0.0
    %219 = vmatpush1.msra.mxu0 0.0
    %220 = vmatprep.subr.mxu0 0.0
    %221 = vmatpush1.msra.mxu0 0.0
    %222 = vmatprep.subr.mxu0 0.0
    %223 = vmatpush1.msra.mxu0 0.0
    %224 = vmatprep.subr.mxu0 0.0
    %225 = vmatpush1.msra.mxu0 0.0
    %226 = vmatprep.subr.mxu0 0.0
    %227 = vmatpush1.msra.mxu0 0.0
    %228 = vmatprep.subr.mxu0 0.0
    %229 = vmatpush1.msra.mxu0 0.0
    %230 = vmatprep.subr.mxu0 0.0
    %231 = vmatpush1.msra.mxu0 0.0
    %232 = vmatprep.subr.mxu0 0.0
    %233 = vmatpush1.msra.mxu0 0.0
    %234 = vmatprep.subr.mxu0 0.0
    %235 = vmatpush1.msra.mxu0 0.0
    %236 = vmatprep.subr.mxu0 0.0
    %237 = vmatpush1.msra.mxu0 0.0
    %238 = vmatprep.subr.mxu0 0.0
    %239 = vmatpush1.msra.mxu0 0.0
    %240 = vmatprep.subr.mxu0 0.0
    %241 = vmatpush1.msra.mxu0 0.0
    %242 = vmatprep.subr.mxu0 0.0
    %243 = vmatpush1.msra.mxu0 0.0
    %244 = vmatprep.subr.mxu0 0.0
    %245 = vmatpush1.msra.mxu0 0.0
    %246 = vmatprep.subr.mxu0 0.0
    %247 = vmatpush1.msra.mxu0 0.0
    %248 = vmatprep.subr.mxu0 0.0
    %249 = vmatpush1.msra.mxu0 0.0
    %250 = vmatprep.subr.mxu0 0.0
    %251 = vmatpush1.msra.mxu0 0.0
    %252 = vmatprep.subr.mxu0 0.0
    %253 = vmatpush1.msra.mxu0 0.0
    %254 = vmatprep.subr.mxu0 0.0
    %255 = vmatpush1.msra.mxu0 0.0
    %256 = vmatprep.subr.mxu0 0.0
    %257 = vmatpush1.msra.mxu0 0.0
    %258 = vmatprep.subr.mxu0 0.0
    %259 = vmatpush1.msra.mxu0 0.0
    %260 = vmatprep.subr.mxu0 0.0
    %261 = vmatpush1.msra.mxu0 0.0
    %262 = vmatprep.subr.mxu0 0.0
    %263 = vmatpush1.msra.mxu0 0.0
    %264 = vmatprep.subr.mxu0 0.0
    %265 = vmatpush1.msra.mxu0 0.0
    %266 = vmatprep.subr.mxu0 0.0
    %267 = vmatpush1.msra.mxu0 0.0
    %268 = vmatprep.subr.mxu0 0.0
    %269 = vmatpush1.msra.mxu0 0.0
    %270 = vmatprep.mubr.f32.mxu0 0.0
    %271 = vmatmul.mubr.f32.gmra.mrb[0].mxu0 %v201
    %v272 = vpop.f32.mrb[0].mxu0
    %v273 = vadd.f32 %v115, %v272
    %v274 = vpop.f32.mrb[0].mxu0
    %v275 = vadd.f32 %v117, %v274
    %276 = vmatprep.mubr.f32.mxu0 0.0
    %277 = vmatmul.mubr.f32.gmra.mrb[0].mxu0 %v204
    %v278 = vpop.f32.mrb[0].mxu0
    %v279 = vadd.f32 %v121, %v278
    %v280 = vpop.f32.mrb[0].mxu0
    %v281 = vadd.f32 %v123, %v280
    %282 = vdwg.mxu0
    %283 = vmatprep.subr.mxu0 0.0
    %284 = vmatpush1.msra.mxu0 %v23
    %285 = vmatprep.subr.mxu0 0.0
    %286 = vmatpush1.msra.mxu0 0.0
    %287 = vmatprep.subr.mxu0 0.0
    %288 = vmatpush1.msra.mxu0 0.0
    %289 = vmatprep.subr.mxu0 0.0
    %290 = vmatpush1.msra.mxu0 0.0
    %291 = vmatprep.subr.mxu0 0.0
    %292 = vmatpush1.msra.mxu0 0.0
    %293 = vmatprep.subr.mxu0 0.0
    %294 = vmatpush1.msra.mxu0 0.0
    %295 = vmatprep.subr.mxu0 0.0
    %296 = vmatpush1.msra.mxu0 0.0
    %297 = vmatprep.subr.mxu0 0.0
    %298 = vmatpush1.msra.mxu0 0.0
    %299 = vmatprep.subr.mxu0 0.0
    %300 = vmatpush1.msra.mxu0 0.0
    %301 = vmatprep.subr.mxu0 0.0
    %302 = vmatpush1.msra.mxu0 0.0
    %303 = vmatprep.subr.mxu0 0.0
    %304 = vmatpush1.msra.mxu0 0.0
    %305 = vmatprep.subr.mxu0 0.0
    %306 = vmatpush1.msra.mxu0 0.0
    %307 = vmatprep.subr.mxu0 0.0
    %308 = vmatpush1.msra.mxu0 0.0
    %309 = vmatprep.subr.mxu0 0.0
    %310 = vmatpush1.msra.mxu0 0.0
    %311 = vmatprep.subr.mxu0 0.0
    %312 = vmatpush1.msra.mxu0 0.0
    %313 = vmatprep.subr.mxu0 0.0
    %314 = vmatpush1.msra.mxu0 0.0
    %315 = vmatprep.subr.mxu0 0.0
    %316 = vmatpush1.msra.mxu0 0.0
    %317 = vmatprep.subr.mxu0 0.0
    %318 = vmatpush1.msra.mxu0 0.0
    %319 = vmatprep.subr.mxu0 0.0
    %320 = vmatpush1.msra.mxu0 0.0
    %321 = vmatprep.subr.mxu0 0.0
    %322 = vmatpush1.msra.mxu0 0.0
    %323 = vmatprep.subr.mxu0 0.0
    %324 = vmatpush1.msra.mxu0 0.0
    %325 = vmatprep.subr.mxu0 0.0
    %326 = vmatpush1.msra.mxu0 0.0
    %327 = vmatprep.subr.mxu0 0.0
    %328 = vmatpush1.msra.mxu0 0.0
    %329 = vmatprep.subr.mxu0 0.0
    %330 = vmatpush1.msra.mxu0 0.0
    %331 = vmatprep.subr.mxu0 0.0
    %332 = vmatpush1.msra.mxu0 0.0
    %333 = vmatprep.subr.mxu0 0.0
    %334 = vmatpush1.msra.mxu0 0.0
    %335 = vmatprep.subr.mxu0 0.0
    %336 = vmatpush1.msra.mxu0 0.0
    %337 = vmatprep.subr.mxu0 0.0
    %338 = vmatpush1.msra.mxu0 0.0
    %339 = vmatprep.subr.mxu0 0.0
    %340 = vmatpush1.msra.mxu0 0.0
    %341 = vmatprep.subr.mxu0 0.0
    %342 = vmatpush1.msra.mxu0 0.0
    %343 = vmatprep.subr.mxu0 0.0
    %344 = vmatpush1.msra.mxu0 0.0
    %345 = vmatprep.subr.mxu0 0.0
    %346 = vmatpush1.msra.mxu0 0.0
    %347 = vmatprep.mubr.f32.mxu0 0.0
    %348 = vmatmul.mubr.f32.gmra.mrb[0].mxu0 %v201
    %v349 = vpop.f32.mrb[0].mxu0
    %v350 = vadd.f32 %v192, %v349
    %v351 = vpop.f32.mrb[0].mxu0
    %352 = vmatprep.mubr.f32.mxu0 0.0
    %353 = vmatmul.mubr.f32.gmra.mrb[0].mxu0 %v204
    %v354 = vpop.f32.mrb[0].mxu0
    %v355 = vadd.f32 %v197, %v354
    %v356 = vpop.f32.mrb[0].mxu0
    %357 = vdwg.mxu0
    %358 = vrot.lane.b32.xlu0 %v21, 126
    %v359 = vpop.permute.xlu0 %358
    %360 = vrot.lane.b32.xlu0 %v22, 126
    %v361 = vpop.permute.xlu0 %360
    %362 = vrot.lane.b32.xlu0 %v23, 126
    %v363 = vpop.permute.xlu0 %362
    %vm364 = vcmp.lt.s32.totalorder %v33, 126
    %v365 = vsel %vm364, %v361, %v363
    %v366 = vsel %vm364, %v359, %v361
    %v367 = vsel %vm364, %v363, %v359
    %s368 = scalar_lea.vmem %s1, 32
    %v369 = vld [vmem:[%s368] sm:$0xff]
    %v370 = vld [vmem:[%s368 + $0x8] sm:$0xff]
    %v372 = vsel %vm41, %v369, 0
    %v375 = vsel %vm41, %v370, 0
    %377 = vmatprep.subr.mxu0 %v365
    %378 = vmatpush1.msra.mxu0 %v366
    %379 = vmatprep.subr.mxu0 0.0
    %380 = vmatpush1.msra.mxu0 0.0
    %381 = vmatprep.subr.mxu0 0.0
    %382 = vmatpush1.msra.mxu0 0.0
    %383 = vmatprep.subr.mxu0 0.0
    %384 = vmatpush1.msra.mxu0 0.0
    %385 = vmatprep.subr.mxu0 0.0
    %386 = vmatpush1.msra.mxu0 0.0
    %387 = vmatprep.subr.mxu0 0.0
    %388 = vmatpush1.msra.mxu0 0.0
    %389 = vmatprep.subr.mxu0 0.0
    %390 = vmatpush1.msra.mxu0 0.0
    %391 = vmatprep.subr.mxu0 0.0
    %392 = vmatpush1.msra.mxu0 0.0
    %393 = vmatprep.subr.mxu0 0.0
    %394 = vmatpush1.msra.mxu0 0.0
    %395 = vmatprep.subr.mxu0 0.0
    %396 = vmatpush1.msra.mxu0 0.0
    %397 = vmatprep.subr.mxu0 0.0
    %398 = vmatpush1.msra.mxu0 0.0
    %399 = vmatprep.subr.mxu0 0.0
    %400 = vmatpush1.msra.mxu0 0.0
    %401 = vmatprep.subr.mxu0 0.0
    %402 = vmatpush1.msra.mxu0 0.0
    %403 = vmatprep.subr.mxu0 0.0
    %404 = vmatpush1.msra.mxu0 0.0
    %405 = vmatprep.subr.mxu0 0.0
    %406 = vmatpush1.msra.mxu0 0.0
    %407 = vmatprep.subr.mxu0 0.0
    %408 = vmatpush1.msra.mxu0 0.0
    %409 = vmatprep.subr.mxu0 0.0
    %410 = vmatpush1.msra.mxu0 0.0
    %411 = vmatprep.subr.mxu0 0.0
    %412 = vmatpush1.msra.mxu0 0.0
    %413 = vmatprep.subr.mxu0 0.0
    %414 = vmatpush1.msra.mxu0 0.0
    %415 = vmatprep.subr.mxu0 0.0
    %416 = vmatpush1.msra.mxu0 0.0
    %417 = vmatprep.subr.mxu0 0.0
    %418 = vmatpush1.msra.mxu0 0.0
    %419 = vmatprep.subr.mxu0 0.0
    %420 = vmatpush1.msra.mxu0 0.0
    %421 = vmatprep.subr.mxu0 0.0
    %422 = vmatpush1.msra.mxu0 0.0
    %423 = vmatprep.subr.mxu0 0.0
    %424 = vmatpush1.msra.mxu0 0.0
    %425 = vmatprep.subr.mxu0 0.0
    %426 = vmatpush1.msra.mxu0 0.0
    %427 = vmatprep.subr.mxu0 0.0
    %428 = vmatpush1.msra.mxu0 0.0
    %429 = vmatprep.subr.mxu0 0.0
    %430 = vmatpush1.msra.mxu0 0.0
    %431 = vmatprep.subr.mxu0 0.0
    %432 = vmatpush1.msra.mxu0 0.0
    %433 = vmatprep.subr.mxu0 0.0
    %434 = vmatpush1.msra.mxu0 0.0
    %435 = vmatprep.subr.mxu0 0.0
    %436 = vmatpush1.msra.mxu0 0.0
    %437 = vmatprep.subr.mxu0 0.0
    %438 = vmatpush1.msra.mxu0 0.0
    %439 = vmatprep.subr.mxu0 0.0
    %440 = vmatpush1.msra.mxu0 0.0
    %441 = vmatprep.mubr.f32.mxu0 0.0
    %442 = vmatmul.mubr.f32.gmra.mrb[0].mxu0 %v372
    %v443 = vpop.f32.mrb[0].mxu0
    %v444 = vadd.f32 0.0, %v443
    %v445 = vpop.f32.mrb[0].mxu0
    %v446 = vadd.f32 0.0, %v445
    %447 = vmatprep.mubr.f32.mxu0 0.0
    %448 = vmatmul.mubr.f32.gmra.mrb[0].mxu0 %v375
    %v449 = vpop.f32.mrb[0].mxu0
    %v450 = vadd.f32 0.0, %v449
    %v451 = vpop.f32.mrb[0].mxu0
    %v452 = vadd.f32 0.0, %v451
    %453 = vdwg.mxu0
    %454 = vmatprep.subr.mxu0 0.0
    %455 = vmatpush1.msra.mxu0 %v367
    %456 = vmatprep.subr.mxu0 0.0
    %457 = vmatpush1.msra.mxu0 0.0
    %458 = vmatprep.subr.mxu0 0.0
    %459 = vmatpush1.msra.mxu0 0.0
    %460 = vmatprep.subr.mxu0 0.0
    %461 = vmatpush1.msra.mxu0 0.0
    %462 = vmatprep.subr.mxu0 0.0
    %463 = vmatpush1.msra.mxu0 0.0
    %464 = vmatprep.subr.mxu0 0.0
    %465 = vmatpush1.msra.mxu0 0.0
    %466 = vmatprep.subr.mxu0 0.0
    %467 = vmatpush1.msra.mxu0 0.0
    %468 = vmatprep.subr.mxu0 0.0
    %469 = vmatpush1.msra.mxu0 0.0
    %470 = vmatprep.subr.mxu0 0.0
    %471 = vmatpush1.msra.mxu0 0.0
    %472 = vmatprep.subr.mxu0 0.0
    %473 = vmatpush1.msra.mxu0 0.0
    %474 = vmatprep.subr.mxu0 0.0
    %475 = vmatpush1.msra.mxu0 0.0
    %476 = vmatprep.subr.mxu0 0.0
    %477 = vmatpush1.msra.mxu0 0.0
    %478 = vmatprep.subr.mxu0 0.0
    %479 = vmatpush1.msra.mxu0 0.0
    %480 = vmatprep.subr.mxu0 0.0
    %481 = vmatpush1.msra.mxu0 0.0
    %482 = vmatprep.subr.mxu0 0.0
    %483 = vmatpush1.msra.mxu0 0.0
    %484 = vmatprep.subr.mxu0 0.0
    %485 = vmatpush1.msra.mxu0 0.0
    %486 = vmatprep.subr.mxu0 0.0
    %487 = vmatpush1.msra.mxu0 0.0
    %488 = vmatprep.subr.mxu0 0.0
    %489 = vmatpush1.msra.mxu0 0.0
    %490 = vmatprep.subr.mxu0 0.0
    %491 = vmatpush1.msra.mxu0 0.0
    %492 = vmatprep.subr.mxu0 0.0
    %493 = vmatpush1.msra.mxu0 0.0
    %494 = vmatprep.subr.mxu0 0.0
    %495 = vmatpush1.msra.mxu0 0.0
    %496 = vmatprep.subr.mxu0 0.0
    %497 = vmatpush1.msra.mxu0 0.0
    %498 = vmatprep.subr.mxu0 0.0
    %499 = vmatpush1.msra.mxu0 0.0
    %500 = vmatprep.subr.mxu0 0.0
    %501 = vmatpush1.msra.mxu0 0.0
    %502 = vmatprep.subr.mxu0 0.0
    %503 = vmatpush1.msra.mxu0 0.0
    %504 = vmatprep.subr.mxu0 0.0
    %505 = vmatpush1.msra.mxu0 0.0
    %506 = vmatprep.subr.mxu0 0.0
    %507 = vmatpush1.msra.mxu0 0.0
    %508 = vmatprep.subr.mxu0 0.0
    %509 = vmatpush1.msra.mxu0 0.0
    %510 = vmatprep.subr.mxu0 0.0
    %511 = vmatpush1.msra.mxu0 0.0
    %512 = vmatprep.subr.mxu0 0.0
    %513 = vmatpush1.msra.mxu0 0.0
    %514 = vmatprep.subr.mxu0 0.0
    %515 = vmatpush1.msra.mxu0 0.0
    %516 = vmatprep.subr.mxu0 0.0
    %517 = vmatpush1.msra.mxu0 0.0
    %518 = vmatprep.mubr.f32.mxu0 0.0
    %519 = vmatmul.mubr.f32.gmra.mrb[0].mxu0 %v372
    %v520 = vpop.f32.mrb[0].mxu0
    %v521 = vadd.f32 0.0, %v520
    %v522 = vpop.f32.mrb[0].mxu0
    %523 = vmatprep.mubr.f32.mxu0 0.0
    %524 = vmatmul.mubr.f32.gmra.mrb[0].mxu0 %v375
    %v525 = vpop.f32.mrb[0].mxu0
    %v526 = vadd.f32 0.0, %v525
    %v527 = vpop.f32.mrb[0].mxu0
    %528 = vdwg.mxu0
    %v529 = vadd.f32 %v273, %v444
    %v530 = vadd.f32 %v275, %v446
    %v531 = vadd.f32 %v350, %v521
    %v532 = vadd.f32 %v279, %v450
    %v533 = vadd.f32 %v281, %v452
    %v534 = vadd.f32 %v355, %v526
    %v535 = vld [vmem:[%s2] sm:$0xff]
    %v536 = vld [vmem:[%s2 + $0x8] sm:$0xff]
    %538 = vset.pattern.permute.xlu0 0
    %539 = vperm.xlu0 %538, %v535
    %v540 = vpop.permute.xlu0 %539
    %543 = vset.pattern.permute.xlu0 0
    %544 = vperm.xlu0 %543, %v536
    %v545 = vpop.permute.xlu0 %544
    %v547 = vadd.f32 %v529, %v540
    %v548 = vadd.f32 %v530, %v540
    %v549 = vadd.f32 %v531, %v540
    %v550 = vadd.f32 %v532, %v545
    %v551 = vadd.f32 %v533, %v545
    %v552 = vadd.f32 %v534, %v545
    %vm553 = vcmp.gt.f32.partialorder %v547, 0.0
    %vm554 = vcmp.gt.f32.partialorder %v548, 0.0
    %vm555 = vcmp.gt.f32.partialorder %v549, 0.0
    %vm556 = vcmp.gt.f32.partialorder %v550, 0.0
    %vm557 = vcmp.gt.f32.partialorder %v551, 0.0
    %vm558 = vcmp.gt.f32.partialorder %v552, 0.0
    %v559 = vmul.f32 %v547, 1.442695
    %v560 = vpow.pop %v559
    %v561 = vmul.f32 %v548, 1.442695
    %v562 = vpow.pop %v561
    %v563 = vmul.f32 %v549, 1.442695
    %v564 = vpow.pop %v563
    %v565 = vmul.f32 %v550, 1.442695
    %v566 = vpow.pop %v565
    %v567 = vmul.f32 %v551, 1.442695
    %v568 = vpow.pop %v567
    %v569 = vmul.f32 %v552, 1.442695
    %v570 = vpow.pop %v569
    %v571 = vsub.f32 %v560, 1.0
    %v572 = vsub.f32 %v562, 1.0
    %v573 = vsub.f32 %v564, 1.0
    %v574 = vsub.f32 %v566, 1.0
    %v575 = vsub.f32 %v568, 1.0
    %v576 = vsub.f32 %v570, 1.0
    %v577 = vsel %vm553, %v547, %v571
    %v578 = vsel %vm554, %v548, %v572
    %v579 = vsel %vm555, %v549, %v573
    %v580 = vsel %vm556, %v550, %v574
    %v581 = vsel %vm557, %v551, %v575
    %v582 = vsel %vm558, %v552, %v576
    %v583 = vld [vmem:[%s3] sm:$0xff]
    %v584 = vld [vmem:[%s3 + $0x8] sm:$0xff]
    %v585 = vld [vmem:[%s4] sm:$0xff]
    %v586 = vld [vmem:[%s4 + $0x8] sm:$0xff]
    %588 = vset.pattern.permute.xlu0 0
    %589 = vperm.xlu0 %588, %v585
    %v590 = vpop.permute.xlu0 %589
    %593 = vset.pattern.permute.xlu0 0
    %594 = vperm.xlu0 %593, %v586
    %v595 = vpop.permute.xlu0 %594
    %v598 = vsel %vm41, %v583, 0
    %v601 = vsel %vm41, %v584, 0
    %603 = vmatprep.subr.mxu0 %v35
    %604 = vmatpush1.msra.mxu0 %v36
    %605 = vmatprep.subr.mxu0 0.0
    %606 = vmatpush1.msra.mxu0 0.0
    %607 = vmatprep.subr.mxu0 0.0
    %608 = vmatpush1.msra.mxu0 0.0
    %609 = vmatprep.subr.mxu0 0.0
    %610 = vmatpush1.msra.mxu0 0.0
    %611 = vmatprep.subr.mxu0 0.0
    %612 = vmatpush1.msra.mxu0 0.0
    %613 = vmatprep.subr.mxu0 0.0
    %614 = vmatpush1.msra.mxu0 0.0
    %615 = vmatprep.subr.mxu0 0.0
    %616 = vmatpush1.msra.mxu0 0.0
    %617 = vmatprep.subr.mxu0 0.0
    %618 = vmatpush1.msra.mxu0 0.0
    %619 = vmatprep.subr.mxu0 0.0
    %620 = vmatpush1.msra.mxu0 0.0
    %621 = vmatprep.subr.mxu0 0.0
    %622 = vmatpush1.msra.mxu0 0.0
    %623 = vmatprep.subr.mxu0 0.0
    %624 = vmatpush1.msra.mxu0 0.0
    %625 = vmatprep.subr.mxu0 0.0
    %626 = vmatpush1.msra.mxu0 0.0
    %627 = vmatprep.subr.mxu0 0.0
    %628 = vmatpush1.msra.mxu0 0.0
    %629 = vmatprep.subr.mxu0 0.0
    %630 = vmatpush1.msra.mxu0 0.0
    %631 = vmatprep.subr.mxu0 0.0
    %632 = vmatpush1.msra.mxu0 0.0
    %633 = vmatprep.subr.mxu0 0.0
    %634 = vmatpush1.msra.mxu0 0.0
    %635 = vmatprep.subr.mxu0 0.0
    %636 = vmatpush1.msra.mxu0 0.0
    %637 = vmatprep.subr.mxu0 0.0
    %638 = vmatpush1.msra.mxu0 0.0
    %639 = vmatprep.subr.mxu0 0.0
    %640 = vmatpush1.msra.mxu0 0.0
    %641 = vmatprep.subr.mxu0 0.0
    %642 = vmatpush1.msra.mxu0 0.0
    %643 = vmatprep.subr.mxu0 0.0
    %644 = vmatpush1.msra.mxu0 0.0
    %645 = vmatprep.subr.mxu0 0.0
    %646 = vmatpush1.msra.mxu0 0.0
    %647 = vmatprep.subr.mxu0 0.0
    %648 = vmatpush1.msra.mxu0 0.0
    %649 = vmatprep.subr.mxu0 0.0
    %650 = vmatpush1.msra.mxu0 0.0
    %651 = vmatprep.subr.mxu0 0.0
    %652 = vmatpush1.msra.mxu0 0.0
    %653 = vmatprep.subr.mxu0 0.0
    %654 = vmatpush1.msra.mxu0 0.0
    %655 = vmatprep.subr.mxu0 0.0
    %656 = vmatpush1.msra.mxu0 0.0
    %657 = vmatprep.subr.mxu0 0.0
    %658 = vmatpush1.msra.mxu0 0.0
    %659 = vmatprep.subr.mxu0 0.0
    %660 = vmatpush1.msra.mxu0 0.0
    %661 = vmatprep.subr.mxu0 0.0
    %662 = vmatpush1.msra.mxu0 0.0
    %663 = vmatprep.subr.mxu0 0.0
    %664 = vmatpush1.msra.mxu0 0.0
    %665 = vmatprep.subr.mxu0 0.0
    %666 = vmatpush1.msra.mxu0 0.0
    %667 = vmatprep.mubr.f32.mxu0 0.0
    %668 = vmatmul.mubr.f32.gmra.mrb[0].mxu0 %v598
    %v669 = vpop.f32.mrb[0].mxu0
    %v670 = vadd.f32 %v590, %v669
    %v671 = vpop.f32.mrb[0].mxu0
    %v672 = vadd.f32 %v590, %v671
    %673 = vmatprep.mubr.f32.mxu0 0.0
    %674 = vmatmul.mubr.f32.gmra.mrb[0].mxu0 %v601
    %v675 = vpop.f32.mrb[0].mxu0
    %v676 = vadd.f32 %v595, %v675
    %v677 = vpop.f32.mrb[0].mxu0
    %v678 = vadd.f32 %v595, %v677
    %679 = vdwg.mxu0
    %680 = vmatprep.subr.mxu0 0.0
    %681 = vmatpush1.msra.mxu0 %v37
    %682 = vmatprep.subr.mxu0 0.0
    %683 = vmatpush1.msra.mxu0 0.0
    %684 = vmatprep.subr.mxu0 0.0
    %685 = vmatpush1.msra.mxu0 0.0
    %686 = vmatprep.subr.mxu0 0.0
    %687 = vmatpush1.msra.mxu0 0.0
    %688 = vmatprep.subr.mxu0 0.0
    %689 = vmatpush1.msra.mxu0 0.0
    %690 = vmatprep.subr.mxu0 0.0
    %691 = vmatpush1.msra.mxu0 0.0
    %692 = vmatprep.subr.mxu0 0.0
    %693 = vmatpush1.msra.mxu0 0.0
    %694 = vmatprep.subr.mxu0 0.0
    %695 = vmatpush1.msra.mxu0 0.0
    %696 = vmatprep.subr.mxu0 0.0
    %697 = vmatpush1.msra.mxu0 0.0
    %698 = vmatprep.subr.mxu0 0.0
    %699 = vmatpush1.msra.mxu0 0.0
    %700 = vmatprep.subr.mxu0 0.0
    %701 = vmatpush1.msra.mxu0 0.0
    %702 = vmatprep.subr.mxu0 0.0
    %703 = vmatpush1.msra.mxu0 0.0
    %704 = vmatprep.subr.mxu0 0.0
    %705 = vmatpush1.msra.mxu0 0.0
    %706 = vmatprep.subr.mxu0 0.0
    %707 = vmatpush1.msra.mxu0 0.0
    %708 = vmatprep.subr.mxu0 0.0
    %709 = vmatpush1.msra.mxu0 0.0
    %710 = vmatprep.subr.mxu0 0.0
    %711 = vmatpush1.msra.mxu0 0.0
    %712 = vmatprep.subr.mxu0 0.0
    %713 = vmatpush1.msra.mxu0 0.0
    %714 = vmatprep.subr.mxu0 0.0
    %715 = vmatpush1.msra.mxu0 0.0
    %716 = vmatprep.subr.mxu0 0.0
    %717 = vmatpush1.msra.mxu0 0.0
    %718 = vmatprep.subr.mxu0 0.0
    %719 = vmatpush1.msra.mxu0 0.0
    %720 = vmatprep.subr.mxu0 0.0
    %721 = vmatpush1.msra.mxu0 0.0
    %722 = vmatprep.subr.mxu0 0.0
    %723 = vmatpush1.msra.mxu0 0.0
    %724 = vmatprep.subr.mxu0 0.0
    %725 = vmatpush1.msra.mxu0 0.0
    %726 = vmatprep.subr.mxu0 0.0
    %727 = vmatpush1.msra.mxu0 0.0
    %728 = vmatprep.subr.mxu0 0.0
    %729 = vmatpush1.msra.mxu0 0.0
    %730 = vmatprep.subr.mxu0 0.0
    %731 = vmatpush1.msra.mxu0 0.0
    %732 = vmatprep.subr.mxu0 0.0
    %733 = vmatpush1.msra.mxu0 0.0
    %734 = vmatprep.subr.mxu0 0.0
    %735 = vmatpush1.msra.mxu0 0.0
    %736 = vmatprep.subr.mxu0 0.0
    %737 = vmatpush1.msra.mxu0 0.0
    %738 = vmatprep.subr.mxu0 0.0
    %739 = vmatpush1.msra.mxu0 0.0
    %740 = vmatprep.subr.mxu0 0.0
    %741 = vmatpush1.msra.mxu0 0.0
    %742 = vmatprep.subr.mxu0 0.0
    %743 = vmatpush1.msra.mxu0 0.0
    %744 = vmatprep.mubr.f32.mxu0 0.0
    %745 = vmatmul.mubr.f32.gmra.mrb[0].mxu0 %v598
    %v746 = vpop.f32.mrb[0].mxu0
    %v747 = vadd.f32 %v590, %v746
    %v748 = vpop.f32.mrb[0].mxu0
    %749 = vmatprep.mubr.f32.mxu0 0.0
    %750 = vmatmul.mubr.f32.gmra.mrb[0].mxu0 %v601
    %v751 = vpop.f32.mrb[0].mxu0
    %v752 = vadd.f32 %v595, %v751
    %v753 = vpop.f32.mrb[0].mxu0
    %754 = vdwg.mxu0
    %v755 = vadd.f32 %v577, %v670
    %v756 = vadd.f32 %v578, %v672
    %v757 = vadd.f32 %v579, %v747
    %v758 = vadd.f32 %v580, %v676
    %v759 = vadd.f32 %v581, %v678
    %v760 = vadd.f32 %v582, %v752
    %761 = vst [vmem:[#allocation2] sm:$0xff] %v755
    %762 = vst [vmem:[#allocation2 + $0x8] sm:$0xff] %v756
    %763 = vst [vmem:[#allocation2 + $0x10] sm:$0xff] %v757
    %764 = vst [vmem:[#allocation2 + $0x18] sm:$0xff] %v758
    %765 = vst [vmem:[#allocation2 + $0x20] sm:$0xff] %v759
    %766 = vst [vmem:[#allocation2 + $0x28] sm:$0xff] %v760
    // Predicated region
    $region22: #{tpu_custom_call.1} parent=1 // pred_check
      _
    $region23: #{tpu_custom_call.1} parent=1 // pred_check_branch
      %768 = sbr.rel (0) target = $region25
    $region24: #{tpu_custom_call.1} parent=1 // pred_region
      %s770 = ssub.s32 768, 768
      %771 = vsyncadd [#allocation3], %s770
      %s772 = sshll.u32 [#allocation2], 4
      %s773 = int_to_ptr.vmem [resolvable:$true] %s772
      %778 = dma.vmem_to_hbm [thread:$0]  %s773, 768, %s5, [#allocation3], 384, 384, 24
    $region25: #{tpu_custom_call.1} parent=1 // pred_fallthru
      _
    // Predicated region
    $region26: #{tpu_custom_call.1} parent=1 // pred_check
      _
    $region27: #{tpu_custom_call.1} parent=1 // pred_check_branch
      %780 = sbr.rel (0) target = $region29
    $region28: #{tpu_custom_call.1} parent=1 // pred_region
      %781 = dma.done [#allocation3], 768
    $region29: #{tpu_custom_call.1} parent=1 // pred_fallthru
      _
    %782 = vsyncpa [#allocation3], 1

</llo_original>
